<compile_context>
chip_gen: v7x
topology: tpu7x:2x2x1
jax: 0.10.0
libtpu: 0.0.40
codegen_flags: <defaults>
</compile_context>

<pallas_src>
import functools

import jax
import jax.numpy as jnp
from jax.experimental import pallas as pl
from jax.experimental.pallas import tpu as pltpu


def _permute_kernel(x_ref, poolT_ref, w_inT_ref, b_in_ref, w_gate_ref, b_gate_ref,
                    out_ref, pooled_acc, *, Bt, P):
    # x_ref:      (Bt, HWc, Cin)   channels-last activation chunk
    # poolT_ref:  (P, HWc)         adaptive-avg-pool matrix chunk (P = pool_scale**2)
    # w_inT_ref:  (Cin, C)         in_conv weight, transposed
    # b_in_ref:   (1, C)           in_conv bias
    # w_gate_ref: (P, P, C)        w_gate[i, s, c] = w_perm[(c//P)*P + s, i]
    # b_gate_ref: (P, C)           b_gate[s, c]    = b_perm[(c//P)*P + s]
    # out_ref:    (Bt, P, C)       lane-dense output (spatial on sublanes, channels on lanes)
    # pooled_acc: (Bt, P, Cin)     f32 scratch accumulating pooled activations over HW chunks
    k = pl.program_id(1)

    @pl.when(k == 0)
    def _init():
        pooled_acc[...] = jnp.zeros_like(pooled_acc)

    poolT = poolT_ref[...]                                              # (P, HWc)
    for b in range(Bt):
        # Adaptive average pooling as an MXU matmul, accumulated over HW chunks.
        pooled_acc[b] += jnp.dot(poolT, x_ref[b],
                                 preferred_element_type=jnp.float32)    # (P, Cin)

    @pl.when(k == pl.num_programs(1) - 1)
    def _finalize():
        w_inT = w_inT_ref[...]                                          # (Cin, C)
        b_in = b_in_ref[...]                                            # (1, C)
        w_gate = w_gate_ref[...]                                        # (P, P, C)
        b_gate = b_gate_ref[...]                                        # (P, C)
        for b in range(Bt):
            # in_conv: 1x1 conv + bias + ReLU, channels on lanes.
            yt = jnp.dot(pooled_acc[b], w_inT,
                         preferred_element_type=jnp.float32) + b_in     # (P, C)
            yt = jnp.maximum(yt, 0.0)
            # Folded (transpose -> grouped 1x1 conv -> ReLU -> sigmoid gate -> transpose):
            #   gate[s, c] = relu(sum_i w_gate[i, s, c] * yt[i, c] + b_gate[s, c])
            #   out[s, c]  = (sigmoid(gate[s, c]) + 1) * yt[s, c]
            gate = jnp.sum(w_gate * yt[:, None, :], axis=0)             # (P, C)
            gate = jnp.maximum(gate + b_gate, 0.0)
            out_ref[b] = ((jax.nn.sigmoid(gate) + 1.0) * yt).astype(out_ref.dtype)


def _make_poolT_matrix(H, W, S):
    # AdaptiveAvgPool2d(S) with H % S == 0 and W % S == 0 (equal-size bins).
    # TODO(synk): PyTorch's variable-width bins for non-divisible H/W are not reproduced.
    bh, bw = H // S, W // S
    oh = jnp.arange(H) // bh
    ow = jnp.arange(W) // bw
    bin_idx = (oh[:, None] * S + ow[None, :]).reshape(H * W)            # (HW,)
    M = (jnp.arange(S * S)[:, None] == bin_idx[None, :]).astype(jnp.float32)
    return M / float(bh * bw)                                           # (P, HW)


def permute_module_forward(x, w_in, b_in, w_perm, b_perm, pool_scale):
    B, Cin, H, W = x.shape
    S = pool_scale
    P = S * S
    C = w_in.shape[0]
    G = C // P
    HW = H * W

    # ---- wrapper-side layout plumbing (channels-last / lane-dense) ----------------
    x_l = jnp.transpose(x.reshape(B, Cin, HW), (0, 2, 1))               # (B, HW, Cin)
    poolT = _make_poolT_matrix(H, W, S)                                 # (P, HW)
    w_inT = jnp.transpose(w_in)                                         # (Cin, C)
    b_in2 = b_in.reshape(1, C)
    wg = w_perm.reshape(G, P, P)                                        # [g, o, i]
    w_gate = jnp.repeat(jnp.transpose(wg, (2, 1, 0)), P, axis=2)        # (P_i, P_s, C)
    b_gate = jnp.repeat(b_perm.reshape(G, P).T, P, axis=1)              # (P_s, C)

    # ---- tiling: batch tile Bt, HW chunk HWc (keeps VMEM bounded on v7x too) ------
    x_elem_bytes = HW * Cin * 4
    x_buf_target = 8 * 1024 * 1024            # per-buffer x slab (Pallas double-buffers it)
    if x_elem_bytes <= x_buf_target:
        HWc = HW
        Bt = max(1, min(B, x_buf_target // x_elem_bytes, 8))
        while B % Bt != 0:                    # keep every batch tile full
            Bt -= 1
    else:
        Bt = 1
        HWc = HW
        cand = (x_buf_target // (Cin * 4)) // 128 * 128
        while cand >= 128:                    # largest multiple of 128 dividing HW
            if HW % cand == 0:
                HWc = cand
                break
            cand -= 128

    grid = (B // Bt, HW // HWc)

    # ---- VMEM budget / cost hints --------------------------------------------------
    weight_bytes = 4 * (P * HWc + Cin * C + C + P * P * C + P * C)
    vmem_est = (2 * Bt * HWc * Cin * 4      # x, double-buffered
                + 2 * Bt * P * C * 4        # out, double-buffered
                + 2 * weight_bytes          # weights (generous)
                + Bt * P * Cin * 4)         # pooled accumulator scratch
    vmem_limit = int(min(max(2 * vmem_est + (8 << 20), 16 << 20), 48 << 20))

    cost = pl.CostEstimate(
        flops=2 * B * (P * HW * Cin + P * Cin * C + P * P * C),
        transcendentals=B * P * C,
        bytes_accessed=4 * (B * HW * Cin + B * P * C + Cin * C + P * HW
                            + P * P * C + P * C + C),
    )

    out = pl.pallas_call(
        functools.partial(_permute_kernel, Bt=Bt, P=P),
        out_shape=jax.ShapeDtypeStruct((B, P, C), jnp.float32),
        grid_spec=pltpu.PrefetchScalarGridSpec(
            num_scalar_prefetch=0,
            grid=grid,
            in_specs=[
                pl.BlockSpec((Bt, HWc, Cin), lambda bi, k: (bi, k, 0)),
                pl.BlockSpec((P, HWc), lambda bi, k: (0, k)),
                pl.BlockSpec((Cin, C), lambda bi, k: (0, 0)),
                pl.BlockSpec((1, C), lambda bi, k: (0, 0)),
                pl.BlockSpec((P, P, C), lambda bi, k: (0, 0, 0)),
                pl.BlockSpec((P, C), lambda bi, k: (0, 0)),
            ],
            out_specs=pl.BlockSpec((Bt, P, C), lambda bi, k: (bi, 0, 0)),
            scratch_shapes=[pltpu.VMEM((Bt, P, Cin), jnp.float32)],
        ),
        compiler_params=pltpu.CompilerParams(
            dimension_semantics=("parallel", "arbitrary"),
            vmem_limit_bytes=vmem_limit),
        cost_estimate=cost,
    )(x_l, poolT, w_inT, b_in2, w_gate, b_gate)

    # lane-dense (B, P, C)  ->  NCHW (B, C, S, S)   (wrapper-side layout plumbing)
    return jnp.transpose(out, (0, 2, 1)).reshape(B, C, S, S)


def _reference(x, w_in, b_in, w_perm, b_perm, S):
    # Literal re-statement of the PyTorch forward in plain JAX (for checking).
    B, Cin, H, W = x.shape
    bh, bw = H // S, W // S
    pooled = x.reshape(B, Cin, S, bh, S, bw).mean(axis=(3, 5))          # (B, Cin, S, S)
    y = jnp.einsum('oc,bchw->bohw', w_in, pooled) + b_in[None, :, None, None]
    y = jnp.maximum(y, 0.0)
    b, c, h, w = y.shape
    P = h * w
    G = c // P
    z = y.reshape(b, G, P, P).transpose(0, 1, 3, 2).reshape(b, c, h, w)
    zf = z.reshape(b, G, P, P)
    wg = w_perm.reshape(G, P, P)
    x1 = jnp.einsum('goi,bgis->bgos', wg, zf) + b_perm.reshape(1, G, P, 1)
    x1 = jnp.maximum(x1, 0.0).reshape(b, c, h, w)
    out = jax.nn.sigmoid(x1) * z + z
    out = out.reshape(b, G, P, P).transpose(0, 1, 3, 2).reshape(b, c, h, w)
    return out


if __name__ == "__main__":
    # Small deterministic config: pool_scale=2 -> P=4; C=128 divisible by 4.
    B, Cin, H, W = 2, 32, 16, 16
    pool_scale = 2
    C = 128                     # hidden channels; C % pool_scale**2 == 0

    key = jax.random.PRNGKey(0)
    k1, k2, k3, k4, k5 = jax.random.split(key, 5)
    x = jax.random.normal(k1, (B, Cin, H, W), jnp.float32)
    w_in = jax.random.normal(k2, (C, Cin), jnp.float32) * 0.1
    b_in = jax.random.normal(k3, (C,), jnp.float32) * 0.1
    w_perm = jax.random.normal(k4, (C, pool_scale * pool_scale), jnp.float32) * 0.1
    b_perm = jax.random.normal(k5, (C,), jnp.float32) * 0.1

    out = permute_module_forward(x, w_in, b_in, w_perm, b_perm, pool_scale)
    out = jax.block_until_ready(out)

    ref = _reference(x, w_in, b_in, w_perm, b_perm, pool_scale)
    assert out.shape == (B, C, pool_scale, pool_scale)
    assert jnp.allclose(out, ref, rtol=2e-3, atol=2e-3), "mismatch vs reference"

    print("KERNEL_OK")
</pallas_src>

<mosaic_0001>
module attributes {stable_mosaic.version = 11 : i64} {
  func.func @_permute_kernel(%arg0: i32, %arg1: i32, %arg2: memref<2x256x32xf32, #tpu.memory_space<vmem>>, %arg3: memref<4x256xf32, #tpu.memory_space<vmem>>, %arg4: memref<32x128xf32, #tpu.memory_space<vmem>>, %arg5: memref<1x128xf32, #tpu.memory_space<vmem>>, %arg6: memref<4x4x128xf32, #tpu.memory_space<vmem>>, %arg7: memref<4x128xf32, #tpu.memory_space<vmem>>, %arg8: memref<2x4x128xf32, #tpu.memory_space<vmem>>, %arg9: memref<2x4x32xf32, #tpu.memory_space<vmem>>) attributes {dimension_semantics = [#tpu.dimension_semantics<parallel>, #tpu.dimension_semantics<arbitrary>], iteration_bounds = array<i64: 1, 1>, scalar_prefetch = 0 : i64, scratch_operands = 1 : i64, tpu.core_type = #tpu.core_type<tc>, window_params = [{transform_indices = @transform_0, window_bounds = array<i64: 2, 256, 32>}, {transform_indices = @transform_1, window_bounds = array<i64: 4, 256>}, {pipeline_mode = #tpu.pipeline_mode<synchronous>, transform_indices = @transform_2, window_bounds = array<i64: 32, 128>}, {pipeline_mode = #tpu.pipeline_mode<synchronous>, transform_indices = @transform_3, window_bounds = array<i64: 1, 128>}, {pipeline_mode = #tpu.pipeline_mode<synchronous>, transform_indices = @transform_4, window_bounds = array<i64: 4, 4, 128>}, {pipeline_mode = #tpu.pipeline_mode<synchronous>, transform_indices = @transform_5, window_bounds = array<i64: 4, 128>}, {transform_indices = @transform_6, window_bounds = array<i64: 2, 4, 128>}]} {
    %c0_i32 = arith.constant 0 : i32
    %0 = arith.cmpi eq, %arg1, %c0_i32 : i32
    %1 = arith.extui %0 : i1 to i32
    %c0_i32_0 = arith.constant 0 : i32
    %2 = arith.cmpi ne, %1, %c0_i32_0 : i32
    scf.if %2 {
      %cst_22 = arith.constant 0.000000e+00 : f32
      %25 = vector.broadcast %cst_22 : f32 to vector<2x4x32xf32>
      %c0_23 = arith.constant 0 : index
      %c0_24 = arith.constant 0 : index
      %c0_25 = arith.constant 0 : index
      %26 = vector.load %arg9[%c0_23, %c0_24, %c0_25] : memref<2x4x32xf32, #tpu.memory_space<vmem>>, vector<2x4x32xf32>
      tpu.vector_store %arg9[%c0_23, %c0_24, %c0_25], %25 {strides = array<i32>} : memref<2x4x32xf32, #tpu.memory_space<vmem>>, vector<2x4x32xf32>,
    } else {
    }
    %c0 = arith.constant 0 : index
    %c0_1 = arith.constant 0 : index
    %3 = vector.load %arg3[%c0, %c0_1] : memref<4x256xf32, #tpu.memory_space<vmem>>, vector<4x256xf32>
    %c0_2 = arith.constant 0 : index
    %c0_3 = arith.constant 0 : index
    %c0_4 = arith.constant 0 : index
    %4 = vector.load %arg9[%c0_2, %c0_3, %c0_4] : memref<2x4x32xf32, #tpu.memory_space<vmem>>, vector<1x4x32xf32>
    %5 = vector.shape_cast %4 : vector<1x4x32xf32> to vector<4x32xf32>
    %c0_5 = arith.constant 0 : index
    %c0_6 = arith.constant 0 : index
    %c0_7 = arith.constant 0 : index
    %6 = vector.load %arg2[%c0_5, %c0_6, %c0_7] : memref<2x256x32xf32, #tpu.memory_space<vmem>>, vector<1x256x32xf32>
    %7 = vector.shape_cast %6 : vector<1x256x32xf32> to vector<256x32xf32>
    %cst = arith.constant dense<0.000000e+00> : vector<4x32xf32>
    %8 = tpu.matmul %3, %7, %cst {dimension_numbers = #tpu.dot_dimension_numbers<[1], [0], [0], [1], [0, 0, 1, 1], [], []>} : vector<4x256xf32>, vector<256x32xf32>, vector<4x32xf32> -> vector<4x32xf32>
    %9 = arith.addf %5, %8 : vector<4x32xf32>
    %c0_8 = arith.constant 0 : index
    %c0_9 = arith.constant 0 : index
    %c0_10 = arith.constant 0 : index
    %10 = vector.load %arg9[%c0_8, %c0_9, %c0_10] : memref<2x4x32xf32, #tpu.memory_space<vmem>>, vector<1x4x32xf32>
    %11 = vector.shape_cast %10 : vector<1x4x32xf32> to vector<4x32xf32>
    %12 = vector.shape_cast %9 : vector<4x32xf32> to vector<1x4x32xf32>
    tpu.vector_store %arg9[%c0_8, %c0_9, %c0_10], %12 {strides = array<i32>} : memref<2x4x32xf32, #tpu.memory_space<vmem>>, vector<1x4x32xf32>,
    %c1 = arith.constant 1 : index
    %c0_11 = arith.constant 0 : index
    %c0_12 = arith.constant 0 : index
    %13 = vector.load %arg9[%c1, %c0_11, %c0_12] : memref<2x4x32xf32, #tpu.memory_space<vmem>>, vector<1x4x32xf32>
    %14 = vector.shape_cast %13 : vector<1x4x32xf32> to vector<4x32xf32>
    %c1_13 = arith.constant 1 : index
    %c0_14 = arith.constant 0 : index
    %c0_15 = arith.constant 0 : index
    %15 = vector.load %arg2[%c1_13, %c0_14, %c0_15] : memref<2x256x32xf32, #tpu.memory_space<vmem>>, vector<1x256x32xf32>
    %16 = vector.shape_cast %15 : vector<1x256x32xf32> to vector<256x32xf32>
    %cst_16 = arith.constant dense<0.000000e+00> : vector<4x32xf32>
    %17 = tpu.matmul %3, %16, %cst_16 {dimension_numbers = #tpu.dot_dimension_numbers<[1], [0], [0], [1], [0, 0, 1, 1], [], []>} : vector<4x256xf32>, vector<256x32xf32>, vector<4x32xf32> -> vector<4x32xf32>
    %18 = arith.addf %14, %17 : vector<4x32xf32>
    %c1_17 = arith.constant 1 : index
    %c0_18 = arith.constant 0 : index
    %c0_19 = arith.constant 0 : index
    %19 = vector.load %arg9[%c1_17, %c0_18, %c0_19] : memref<2x4x32xf32, #tpu.memory_space<vmem>>, vector<1x4x32xf32>
    %20 = vector.shape_cast %19 : vector<1x4x32xf32> to vector<4x32xf32>
    %21 = vector.shape_cast %18 : vector<4x32xf32> to vector<1x4x32xf32>
    tpu.vector_store %arg9[%c1_17, %c0_18, %c0_19], %21 {strides = array<i32>} : memref<2x4x32xf32, #tpu.memory_space<vmem>>, vector<1x4x32xf32>,
    %c0_i32_20 = arith.constant 0 : i32
    %22 = arith.cmpi eq, %arg1, %c0_i32_20 : i32
    %23 = arith.extui %22 : i1 to i32
    %c0_i32_21 = arith.constant 0 : i32
    %24 = arith.cmpi ne, %23, %c0_i32_21 : i32
    scf.if %24 {
      %c0_22 = arith.constant 0 : index
      %c0_23 = arith.constant 0 : index
      %25 = vector.load %arg4[%c0_22, %c0_23] : memref<32x128xf32, #tpu.memory_space<vmem>>, vector<32x128xf32>
      %c0_24 = arith.constant 0 : index
      %c0_25 = arith.constant 0 : index
      %26 = vector.load %arg5[%c0_24, %c0_25] : memref<1x128xf32, #tpu.memory_space<vmem>>, vector<1x128xf32>
      %c0_26 = arith.constant 0 : index
      %c0_27 = arith.constant 0 : index
      %c0_28 = arith.constant 0 : index
      %27 = vector.load %arg6[%c0_26, %c0_27, %c0_28] : memref<4x4x128xf32, #tpu.memory_space<vmem>>, vector<4x4x128xf32>
      %c0_29 = arith.constant 0 : index
      %c0_30 = arith.constant 0 : index
      %28 = vector.load %arg7[%c0_29, %c0_30] : memref<4x128xf32, #tpu.memory_space<vmem>>, vector<4x128xf32>
      %c0_31 = arith.constant 0 : index
      %c0_32 = arith.constant 0 : index
      %c0_33 = arith.constant 0 : index
      %29 = vector.load %arg9[%c0_31, %c0_32, %c0_33] : memref<2x4x32xf32, #tpu.memory_space<vmem>>, vector<1x4x32xf32>
      %30 = vector.shape_cast %29 : vector<1x4x32xf32> to vector<4x32xf32>
      %cst_34 = arith.constant dense<0.000000e+00> : vector<4x128xf32>
      %31 = tpu.matmul %30, %25, %cst_34 {dimension_numbers = #tpu.dot_dimension_numbers<[1], [0], [0], [1], [0, 0, 1, 1], [], []>} : vector<4x32xf32>, vector<32x128xf32>, vector<4x128xf32> -> vector<4x128xf32>
      %32 = vector.broadcast %26 : vector<1x128xf32> to vector<4x128xf32>
      %33 = arith.addf %31, %32 : vector<4x128xf32>
      %cst_35 = arith.constant 0.000000e+00 : f32
      %34 = vector.broadcast %cst_35 : f32 to vector<4x128xf32>
      %35 = arith.maximumf %33, %34 : vector<4x128xf32>
      %36 = vector.shape_cast %35 : vector<4x128xf32> to vector<4x1x128xf32>
      %37 = vector.broadcast %36 : vector<4x1x128xf32> to vector<4x4x128xf32>
      %38 = arith.mulf %27, %37 : vector<4x4x128xf32>
      %cst_36 = arith.constant dense<0.000000e+00> : vector<4x128xf32>
      %39 = vector.multi_reduction <add>, %38, %cst_36 [0] : vector<4x4x128xf32> to vector<4x128xf32>
      %40 = arith.addf %39, %28 : vector<4x128xf32>
      %cst_37 = arith.constant 0.000000e+00 : f32
      %41 = vector.broadcast %cst_37 : f32 to vector<4x128xf32>
      %42 = arith.maximumf %40, %41 : vector<4x128xf32>
      %43 = arith.negf %42 : vector<4x128xf32>
      %44 = math.exp %43 : vector<4x128xf32>
      %cst_38 = arith.constant 1.000000e+00 : f32
      %45 = vector.broadcast %cst_38 : f32 to vector<4x128xf32>
      %46 = arith.addf %45, %44 : vector<4x128xf32>
      %47 = arith.divf %45, %46 : vector<4x128xf32>
      %cst_39 = arith.constant 1.000000e+00 : f32
      %48 = vector.broadcast %cst_39 : f32 to vector<4x128xf32>
      %49 = arith.addf %47, %48 : vector<4x128xf32>
      %50 = arith.mulf %49, %35 : vector<4x128xf32>
      %c0_40 = arith.constant 0 : index
      %c0_41 = arith.constant 0 : index
      %c0_42 = arith.constant 0 : index
      %51 = vector.load %arg8[%c0_40, %c0_41, %c0_42] : memref<2x4x128xf32, #tpu.memory_space<vmem>>, vector<1x4x128xf32>
      %52 = vector.shape_cast %51 : vector<1x4x128xf32> to vector<4x128xf32>
      %53 = vector.shape_cast %50 : vector<4x128xf32> to vector<1x4x128xf32>
      tpu.vector_store %arg8[%c0_40, %c0_41, %c0_42], %53 {strides = array<i32>} : memref<2x4x128xf32, #tpu.memory_space<vmem>>, vector<1x4x128xf32>,
      %c1_43 = arith.constant 1 : index
      %c0_44 = arith.constant 0 : index
      %c0_45 = arith.constant 0 : index
      %54 = vector.load %arg9[%c1_43, %c0_44, %c0_45] : memref<2x4x32xf32, #tpu.memory_space<vmem>>, vector<1x4x32xf32>
      %55 = vector.shape_cast %54 : vector<1x4x32xf32> to vector<4x32xf32>
      %cst_46 = arith.constant dense<0.000000e+00> : vector<4x128xf32>
      %56 = tpu.matmul %55, %25, %cst_46 {dimension_numbers = #tpu.dot_dimension_numbers<[1], [0], [0], [1], [0, 0, 1, 1], [], []>} : vector<4x32xf32>, vector<32x128xf32>, vector<4x128xf32> -> vector<4x128xf32>
      %57 = vector.broadcast %26 : vector<1x128xf32> to vector<4x128xf32>
      %58 = arith.addf %56, %57 : vector<4x128xf32>
      %cst_47 = arith.constant 0.000000e+00 : f32
      %59 = vector.broadcast %cst_47 : f32 to vector<4x128xf32>
      %60 = arith.maximumf %58, %59 : vector<4x128xf32>
      %61 = vector.shape_cast %60 : vector<4x128xf32> to vector<4x1x128xf32>
      %62 = vector.broadcast %61 : vector<4x1x128xf32> to vector<4x4x128xf32>
      %63 = arith.mulf %27, %62 : vector<4x4x128xf32>
      %cst_48 = arith.constant dense<0.000000e+00> : vector<4x128xf32>
      %64 = vector.multi_reduction <add>, %63, %cst_48 [0] : vector<4x4x128xf32> to vector<4x128xf32>
      %65 = arith.addf %64, %28 : vector<4x128xf32>
      %cst_49 = arith.constant 0.000000e+00 : f32
      %66 = vector.broadcast %cst_49 : f32 to vector<4x128xf32>
      %67 = arith.maximumf %65, %66 : vector<4x128xf32>
      %68 = arith.negf %67 : vector<4x128xf32>
      %69 = math.exp %68 : vector<4x128xf32>
      %cst_50 = arith.constant 1.000000e+00 : f32
      %70 = vector.broadcast %cst_50 : f32 to vector<4x128xf32>
      %71 = arith.addf %70, %69 : vector<4x128xf32>
      %72 = arith.divf %70, %71 : vector<4x128xf32>
      %cst_51 = arith.constant 1.000000e+00 : f32
      %73 = vector.broadcast %cst_51 : f32 to vector<4x128xf32>
      %74 = arith.addf %72, %73 : vector<4x128xf32>
      %75 = arith.mulf %74, %60 : vector<4x128xf32>
      %c1_52 = arith.constant 1 : index
      %c0_53 = arith.constant 0 : index
      %c0_54 = arith.constant 0 : index
      %76 = vector.load %arg8[%c1_52, %c0_53, %c0_54] : memref<2x4x128xf32, #tpu.memory_space<vmem>>, vector<1x4x128xf32>
      %77 = vector.shape_cast %76 : vector<1x4x128xf32> to vector<4x128xf32>
      %78 = vector.shape_cast %75 : vector<4x128xf32> to vector<1x4x128xf32>
      tpu.vector_store %arg8[%c1_52, %c0_53, %c0_54], %78 {strides = array<i32>} : memref<2x4x128xf32, #tpu.memory_space<vmem>>, vector<1x4x128xf32>,
    } else {
    }
    return
  }
  func.func @transform_0(%arg0: i32, %arg1: i32) -> (i32, i32, i32) {
    %c0_i32 = arith.constant 0 : i32
    %c0_i32_0 = arith.constant 0 : i32
    return %arg0, %arg1, %c0_i32 : i32, i32, i32
  }
  func.func @transform_1(%arg0: i32, %arg1: i32) -> (i32, i32) {
    %c0_i32 = arith.constant 0 : i32
    %c0_i32_0 = arith.constant 0 : i32
    return %c0_i32, %arg1 : i32, i32
  }
  func.func @transform_2(%arg0: i32, %arg1: i32) -> (i32, i32) {
    %c0_i32 = arith.constant 0 : i32
    %c0_i32_0 = arith.constant 0 : i32
    %c0_i32_1 = arith.constant 0 : i32
    return %c0_i32, %c0_i32_0 : i32, i32
  }
  func.func @transform_3(%arg0: i32, %arg1: i32) -> (i32, i32) {
    %c0_i32 = arith.constant 0 : i32
    %c0_i32_0 = arith.constant 0 : i32
    %c0_i32_1 = arith.constant 0 : i32
    return %c0_i32, %c0_i32_0 : i32, i32
  }
  func.func @transform_4(%arg0: i32, %arg1: i32) -> (i32, i32, i32) {
    %c0_i32 = arith.constant 0 : i32
    %c0_i32_0 = arith.constant 0 : i32
    %c0_i32_1 = arith.constant 0 : i32
    %c0_i32_2 = arith.constant 0 : i32
    return %c0_i32, %c0_i32_0, %c0_i32_1 : i32, i32, i32
  }
  func.func @transform_5(%arg0: i32, %arg1: i32) -> (i32, i32) {
    %c0_i32 = arith.constant 0 : i32
    %c0_i32_0 = arith.constant 0 : i32
    %c0_i32_1 = arith.constant 0 : i32
    return %c0_i32, %c0_i32_0 : i32, i32
  }
  func.func @transform_6(%arg0: i32, %arg1: i32) -> (i32, i32, i32) {
    %c0_i32 = arith.constant 0 : i32
    %c0_i32_0 = arith.constant 0 : i32
    %c0_i32_1 = arith.constant 0 : i32
    return %arg0, %c0_i32, %c0_i32_0 : i32, i32, i32
  }
}

</mosaic_0001>

<llo_original>
// kernel: tpu_custom_call.1
$region0: #{tpu_custom_call.1}
  #allocation0 [shape = 'u32[]', space=smem, size = 0x4, offset = 0x4, fixed_abs, tag = 'smem constant byte address 0x4 - core index']
  #allocation1 [shape = 'u32[144,128]{1,0:T(1,128)}', space=vmem, size = 0x12000, scoped, tag = 'internal scratch']
  #allocation2 [shape = 'f32[2,4,32]{2,1,0:T(4,128)}', space=vmem, size = 0x1000, scoped, tag = 'scratch operand']
  %s0 = inlined_call_operand.vmem [shape: f32[2,256,32], index: 0, kind: input, shape index: {}]
  %s1 = inlined_call_operand.vmem [shape: f32[4,256], index: 1, kind: input, shape index: {}]
  %s2 = inlined_call_operand.vmem [shape: f32[32,128], index: 2, kind: input, shape index: {}]
  %s3 = inlined_call_operand.vmem [shape: f32[1,128], index: 3, kind: input, shape index: {}]
  %s4 = inlined_call_operand.vmem [shape: f32[4,4,128], index: 4, kind: input, shape index: {}]
  %s5 = inlined_call_operand.vmem [shape: f32[4,128], index: 5, kind: input, shape index: {}]
  %s6 = inlined_call_operand.hbm [shape: f32[2,4,128], index: 6, kind: output, shape index: {}]
  %s7 = sld [smem:[#allocation0]]
  $region42: #{tpu_custom_call.1} parent=0
    _
  %s9 = ssub.s32 1, %s7
  %s10 = scalar_select 0, %s9, %s7
  $region1: #{tpu_custom_call.1} parent=0
    #allocation3 [shape = 'u8[4096]{0}', space=vmem, size = 0x1000, scoped, tag = 'output window, operand 0, single buffered']
    #allocation4 [shape = 's32[1]{0}', space=sflag, size = 0x4, scoped, tag = 'scoped memory for tpu_custom_call.1']
    %11 = vsyncpa [#allocation4], 0
    // Predicated region
    $region2: #{tpu_custom_call.1} parent=1 // pred_check
      _
    $region3: #{tpu_custom_call.1} parent=1 // pred_check_branch
      %13 = sbr.rel (0) target = $region5
    $region4: #{tpu_custom_call.1} parent=1 // pred_region
      _
    $region5: #{tpu_custom_call.1} parent=1 // pred_fallthru
      _
    // Predicated region
    $region6: #{tpu_custom_call.1} parent=1 // pred_check
      _
    $region7: #{tpu_custom_call.1} parent=1 // pred_check_branch
      %15 = sbr.rel (0) target = $region9
    $region8: #{tpu_custom_call.1} parent=1 // pred_region
      _
    $region9: #{tpu_custom_call.1} parent=1 // pred_fallthru
      _
    // Predicated region
    $region10: #{tpu_custom_call.1} parent=1 // pred_check
      _
    $region11: #{tpu_custom_call.1} parent=1 // pred_check_branch
      %17 = sbr.rel (0) target = $region13
    $region12: #{tpu_custom_call.1} parent=1 // pred_region
      _
    $region13: #{tpu_custom_call.1} parent=1 // pred_fallthru
      _
    // Predicated region
    $region14: #{tpu_custom_call.1} parent=1 // pred_check
      _
    $region15: #{tpu_custom_call.1} parent=1 // pred_check_branch
      %19 = sbr.rel (0) target = $region17
    $region16: #{tpu_custom_call.1} parent=1 // pred_region
      _
    $region17: #{tpu_custom_call.1} parent=1 // pred_fallthru
      _
    // Predicated region
    $region18: #{tpu_custom_call.1} parent=1 // pred_check
      _
    $region19: #{tpu_custom_call.1} parent=1 // pred_check_branch
      %21 = sbr.rel (0) target = $region21
    $region20: #{tpu_custom_call.1} parent=1 // pred_region
      _
    $region21: #{tpu_custom_call.1} parent=1 // pred_fallthru
      _
    // Predicated region
    $region22: #{tpu_custom_call.1} parent=1 // pred_check
      _
    $region23: #{tpu_custom_call.1} parent=1 // pred_check_branch
      %23 = sbr.rel (0) target = $region25
    $region24: #{tpu_custom_call.1} parent=1 // pred_region
      _
    $region25: #{tpu_custom_call.1} parent=1 // pred_fallthru
      _
    %p24 = scmp.eq.s32.totalorder 0, 0
    // Predicated region
    $region26: #{tpu_custom_call.1} parent=1 // pred_check
      %p25 = pneg %p24
    $region27: #{tpu_custom_call.1} parent=1 // pred_check_branch
      %27 = sbr.rel (%p25) target = $region29
    $region28: #{tpu_custom_call.1} parent=1 // pred_region
      %vm28 = vcmask 257024
      %29 = vst.msk [vmem:[#allocation2] sm:$0xf] %vm28, 0.0
      %30 = vst.msk [vmem:[#allocation2 + $0x4] sm:$0xf] %vm28, 0.0
    $region29: #{tpu_custom_call.1} parent=1 // pred_fallthru
      _
    %v31 = vld [vmem:[%s1] sm:$0xff]
    %v32 = vld [vmem:[#allocation2] sm:$0xf]
    %v33 = vld [vmem:[%s0] sm:$0xff]
    %v34 = vld [vmem:[%s0 + $0x8] sm:$0xff]
    %v35 = vld [vmem:[%s0 + $0x10] sm:$0xff]
    %v36 = vld [vmem:[%s0 + $0x18] sm:$0xff]
    %v37 = vld [vmem:[%s0 + $0x20] sm:$0xff]
    %v38 = vld [vmem:[%s0 + $0x28] sm:$0xff]
    %v39 = vld [vmem:[%s0 + $0x30] sm:$0xff]
    %v40 = vld [vmem:[%s0 + $0x38] sm:$0xff]
    %v41 = vld [vmem:[%s0 + $0x40] sm:$0xff]
    %v42 = vld [vmem:[%s0 + $0x48] sm:$0xff]
    %v43 = vld [vmem:[%s0 + $0x50] sm:$0xff]
    %v44 = vld [vmem:[%s0 + $0x58] sm:$0xff]
    %v45 = vld [vmem:[%s0 + $0x60] sm:$0xff]
    %v46 = vld [vmem:[%s0 + $0x68] sm:$0xff]
    %v47 = vld [vmem:[%s0 + $0x70] sm:$0xff]
    %v48 = vld [vmem:[%s0 + $0x78] sm:$0xff]
    %v49 = vld [vmem:[%s0 + $0x80] sm:$0xff]
    %v50 = vld [vmem:[%s0 + $0x88] sm:$0xff]
    %v51 = vld [vmem:[%s0 + $0x90] sm:$0xff]
    %v52 = vld [vmem:[%s0 + $0x98] sm:$0xff]
    %v53 = vld [vmem:[%s0 + $0xa0] sm:$0xff]
    %v54 = vld [vmem:[%s0 + $0xa8] sm:$0xff]
    %v55 = vld [vmem:[%s0 + $0xb0] sm:$0xff]
    %v56 = vld [vmem:[%s0 + $0xb8] sm:$0xff]
    %v57 = vld [vmem:[%s0 + $0xc0] sm:$0xff]
    %v58 = vld [vmem:[%s0 + $0xc8] sm:$0xff]
    %v59 = vld [vmem:[%s0 + $0xd0] sm:$0xff]
    %v60 = vld [vmem:[%s0 + $0xd8] sm:$0xff]
    %v61 = vld [vmem:[%s0 + $0xe0] sm:$0xff]
    %v62 = vld [vmem:[%s0 + $0xe8] sm:$0xff]
    %v63 = vld [vmem:[%s0 + $0xf0] sm:$0xff]
    %v64 = vld [vmem:[%s0 + $0xf8] sm:$0xff]
    %v66 = vcombine.high %v31, %v31
    %68 = vmatprep.subr.mxu0 0.0
    %69 = vmatpush1.msra.mxu0 %v33
    %70 = vmatprep.subr.mxu0 0.0
    %71 = vmatpush1.msra.mxu0 %v34
    %72 = vmatprep.subr.mxu0 0.0
    %73 = vmatpush1.msra.mxu0 %v35
    %74 = vmatprep.subr.mxu0 0.0
    %75 = vmatpush1.msra.mxu0 %v36
    %76 = vmatprep.subr.mxu0 0.0
    %77 = vmatpush1.msra.mxu0 %v37
    %78 = vmatprep.subr.mxu0 0.0
    %79 = vmatpush1.msra.mxu0 %v38
    %80 = vmatprep.subr.mxu0 0.0
    %81 = vmatpush1.msra.mxu0 %v39
    %82 = vmatprep.subr.mxu0 0.0
    %83 = vmatpush1.msra.mxu0 %v40
    %84 = vmatprep.subr.mxu0 0.0
    %85 = vmatpush1.msra.mxu0 %v41
    %86 = vmatprep.subr.mxu0 0.0
    %87 = vmatpush1.msra.mxu0 %v42
    %88 = vmatprep.subr.mxu0 0.0
    %89 = vmatpush1.msra.mxu0 %v43
    %90 = vmatprep.subr.mxu0 0.0
    %91 = vmatpush1.msra.mxu0 %v44
    %92 = vmatprep.subr.mxu0 0.0
    %93 = vmatpush1.msra.mxu0 %v45
    %94 = vmatprep.subr.mxu0 0.0
    %95 = vmatpush1.msra.mxu0 %v46
    %96 = vmatprep.subr.mxu0 0.0
    %97 = vmatpush1.msra.mxu0 %v47
    %98 = vmatprep.subr.mxu0 0.0
    %99 = vmatpush1.msra.mxu0 %v48
    %100 = vmatprep.subr.mxu0 0.0
    %101 = vmatpush1.msra.mxu0 %v49
    %102 = vmatprep.subr.mxu0 0.0
    %103 = vmatpush1.msra.mxu0 %v50
    %104 = vmatprep.subr.mxu0 0.0
    %105 = vmatpush1.msra.mxu0 %v51
    %106 = vmatprep.subr.mxu0 0.0
    %107 = vmatpush1.msra.mxu0 %v52
    %108 = vmatprep.subr.mxu0 0.0
    %109 = vmatpush1.msra.mxu0 %v53
    %110 = vmatprep.subr.mxu0 0.0
    %111 = vmatpush1.msra.mxu0 %v54
    %112 = vmatprep.subr.mxu0 0.0
    %113 = vmatpush1.msra.mxu0 %v55
    %114 = vmatprep.subr.mxu0 0.0
    %115 = vmatpush1.msra.mxu0 %v56
    %116 = vmatprep.subr.mxu0 0.0
    %117 = vmatpush1.msra.mxu0 %v57
    %118 = vmatprep.subr.mxu0 0.0
    %119 = vmatpush1.msra.mxu0 %v58
    %120 = vmatprep.subr.mxu0 0.0
    %121 = vmatpush1.msra.mxu0 %v59
    %122 = vmatprep.subr.mxu0 0.0
    %123 = vmatpush1.msra.mxu0 %v60
    %124 = vmatprep.subr.mxu0 0.0
    %125 = vmatpush1.msra.mxu0 %v61
    %126 = vmatprep.subr.mxu0 0.0
    %127 = vmatpush1.msra.mxu0 %v62
    %128 = vmatprep.subr.mxu0 0.0
    %129 = vmatpush1.msra.mxu0 %v63
    %130 = vmatprep.subr.mxu0 0.0
    %131 = vmatpush1.msra.mxu0 %v64
    %132 = vmatprep.mubr.f32.mxu0 %v66
    %133 = vmatmul.mubr.f32.gmra.mrb[0].mxu0 %v31
    %v134 = vpop.f32.mrb[0].mxu0
    %v135 = vadd.f32 0.0, %v134
    %v136 = vpop.f32.mrb[0].mxu0
    %137 = vdwg.mxu0
    %v138 = vadd.f32 %v32, %v135
    %vm139 = vcmask 257024
    %140 = vst.msk [vmem:[#allocation2] sm:$0xf] %vm139, %v138
    %s141 = scalar_lea.vmem [#allocation2], 4
    %v142 = vld [vmem:[%s141] sm:$0xf]
    %s143 = scalar_lea.vmem %s0, 256
    %v144 = vld [vmem:[%s143] sm:$0xff]
    %v145 = vld [vmem:[%s143 + $0x8] sm:$0xff]
    %v146 = vld [vmem:[%s143 + $0x10] sm:$0xff]
    %v147 = vld [vmem:[%s143 + $0x18] sm:$0xff]
    %v148 = vld [vmem:[%s143 + $0x20] sm:$0xff]
    %v149 = vld [vmem:[%s143 + $0x28] sm:$0xff]
    %v150 = vld [vmem:[%s143 + $0x30] sm:$0xff]
    %v151 = vld [vmem:[%s143 + $0x38] sm:$0xff]
    %v152 = vld [vmem:[%s143 + $0x40] sm:$0xff]
    %v153 = vld [vmem:[%s143 + $0x48] sm:$0xff]
    %v154 = vld [vmem:[%s143 + $0x50] sm:$0xff]
    %v155 = vld [vmem:[%s143 + $0x58] sm:$0xff]
    %v156 = vld [vmem:[%s143 + $0x60] sm:$0xff]
    %v157 = vld [vmem:[%s143 + $0x68] sm:$0xff]
    %v158 = vld [vmem:[%s143 + $0x70] sm:$0xff]
    %v159 = vld [vmem:[%s143 + $0x78] sm:$0xff]
    %v160 = vld [vmem:[%s143 + $0x80] sm:$0xff]
    %v161 = vld [vmem:[%s143 + $0x88] sm:$0xff]
    %v162 = vld [vmem:[%s143 + $0x90] sm:$0xff]
    %v163 = vld [vmem:[%s143 + $0x98] sm:$0xff]
    %v164 = vld [vmem:[%s143 + $0xa0] sm:$0xff]
    %v165 = vld [vmem:[%s143 + $0xa8] sm:$0xff]
    %v166 = vld [vmem:[%s143 + $0xb0] sm:$0xff]
    %v167 = vld [vmem:[%s143 + $0xb8] sm:$0xff]
    %v168 = vld [vmem:[%s143 + $0xc0] sm:$0xff]
    %v169 = vld [vmem:[%s143 + $0xc8] sm:$0xff]
    %v170 = vld [vmem:[%s143 + $0xd0] sm:$0xff]
    %v171 = vld [vmem:[%s143 + $0xd8] sm:$0xff]
    %v172 = vld [vmem:[%s143 + $0xe0] sm:$0xff]
    %v173 = vld [vmem:[%s143 + $0xe8] sm:$0xff]
    %v174 = vld [vmem:[%s143 + $0xf0] sm:$0xff]
    %v175 = vld [vmem:[%s143 + $0xf8] sm:$0xff]
    %176 = vmatprep.subr.mxu0 0.0
    %177 = vmatpush1.msra.mxu0 %v144
    %178 = vmatprep.subr.mxu0 0.0
    %179 = vmatpush1.msra.mxu0 %v145
    %180 = vmatprep.subr.mxu0 0.0
    %181 = vmatpush1.msra.mxu0 %v146
    %182 = vmatprep.subr.mxu0 0.0
    %183 = vmatpush1.msra.mxu0 %v147
    %184 = vmatprep.subr.mxu0 0.0
    %185 = vmatpush1.msra.mxu0 %v148
    %186 = vmatprep.subr.mxu0 0.0
    %187 = vmatpush1.msra.mxu0 %v149
    %188 = vmatprep.subr.mxu0 0.0
    %189 = vmatpush1.msra.mxu0 %v150
    %190 = vmatprep.subr.mxu0 0.0
    %191 = vmatpush1.msra.mxu0 %v151
    %192 = vmatprep.subr.mxu0 0.0
    %193 = vmatpush1.msra.mxu0 %v152
    %194 = vmatprep.subr.mxu0 0.0
    %195 = vmatpush1.msra.mxu0 %v153
    %196 = vmatprep.subr.mxu0 0.0
    %197 = vmatpush1.msra.mxu0 %v154
    %198 = vmatprep.subr.mxu0 0.0
    %199 = vmatpush1.msra.mxu0 %v155
    %200 = vmatprep.subr.mxu0 0.0
    %201 = vmatpush1.msra.mxu0 %v156
    %202 = vmatprep.subr.mxu0 0.0
    %203 = vmatpush1.msra.mxu0 %v157
    %204 = vmatprep.subr.mxu0 0.0
    %205 = vmatpush1.msra.mxu0 %v158
    %206 = vmatprep.subr.mxu0 0.0
    %207 = vmatpush1.msra.mxu0 %v159
    %208 = vmatprep.subr.mxu0 0.0
    %209 = vmatpush1.msra.mxu0 %v160
    %210 = vmatprep.subr.mxu0 0.0
    %211 = vmatpush1.msra.mxu0 %v161
    %212 = vmatprep.subr.mxu0 0.0
    %213 = vmatpush1.msra.mxu0 %v162
    %214 = vmatprep.subr.mxu0 0.0
    %215 = vmatpush1.msra.mxu0 %v163
    %216 = vmatprep.subr.mxu0 0.0
    %217 = vmatpush1.msra.mxu0 %v164
    %218 = vmatprep.subr.mxu0 0.0
    %219 = vmatpush1.msra.mxu0 %v165
    %220 = vmatprep.subr.mxu0 0.0
    %221 = vmatpush1.msra.mxu0 %v166
    %222 = vmatprep.subr.mxu0 0.0
    %223 = vmatpush1.msra.mxu0 %v167
    %224 = vmatprep.subr.mxu0 0.0
    %225 = vmatpush1.msra.mxu0 %v168
    %226 = vmatprep.subr.mxu0 0.0
    %227 = vmatpush1.msra.mxu0 %v169
    %228 = vmatprep.subr.mxu0 0.0
    %229 = vmatpush1.msra.mxu0 %v170
    %230 = vmatprep.subr.mxu0 0.0
    %231 = vmatpush1.msra.mxu0 %v171
    %232 = vmatprep.subr.mxu0 0.0
    %233 = vmatpush1.msra.mxu0 %v172
    %234 = vmatprep.subr.mxu0 0.0
    %235 = vmatpush1.msra.mxu0 %v173
    %236 = vmatprep.subr.mxu0 0.0
    %237 = vmatpush1.msra.mxu0 %v174
    %238 = vmatprep.subr.mxu0 0.0
    %239 = vmatpush1.msra.mxu0 %v175
    %240 = vmatprep.mubr.f32.mxu0 %v66
    %241 = vmatmul.mubr.f32.gmra.mrb[0].mxu0 %v31
    %v242 = vpop.f32.mrb[0].mxu0
    %v243 = vadd.f32 0.0, %v242
    %v244 = vpop.f32.mrb[0].mxu0
    %245 = vdwg.mxu0
    %v246 = vadd.f32 %v142, %v243
    %247 = vst.msk [vmem:[%s141] sm:$0xf] %vm139, %v246
    // Predicated region
    $region30: #{tpu_custom_call.1} parent=1 // pred_check
      %p248 = pneg %p24
    $region31: #{tpu_custom_call.1} parent=1 // pred_check_branch
      %250 = sbr.rel (%p248) target = $region33
    $region32: #{tpu_custom_call.1} parent=1 // pred_region
      %v251 = vld [vmem:[%s2] sm:$0xff]
      %v252 = vld [vmem:[%s2 + $0x8] sm:$0xff]
      %v253 = vld [vmem:[%s2 + $0x10] sm:$0xff]
      %v254 = vld [vmem:[%s2 + $0x18] sm:$0xff]
      %v255 = vld [vmem:[%s3] sm:$0x1]
      %v256 = vld [vmem:[%s4] sm:$0xf]
      %v257 = vld [vmem:[%s4 + $0x4] sm:$0xf]
      %v258 = vld [vmem:[%s4 + $0x8] sm:$0xf]
      %v259 = vld [vmem:[%s4 + $0xc] sm:$0xf]
      %v260 = vld [vmem:[%s5] sm:$0xf]
      %v261 = vld [vmem:[#allocation2] sm:$0xf]
      %v263 = vlaneseq
      %v264 = vshrl.u32 %v263, 7
      %v265 = vsub.s32 0, %v264
      %v266 = vrot.slane %v255, %v265
      %vm268 = vcmask 261120
      %v270 = vsel %vm268, %v261, 0
      %272 = vmatprep.subr.mxu0 0.0
      %273 = vmatpush1.msra.mxu0 %v251
      %274 = vmatprep.subr.mxu0 0.0
      %275 = vmatpush1.msra.mxu0 %v252
      %276 = vmatprep.subr.mxu0 0.0
      %277 = vmatpush1.msra.mxu0 %v253
      %278 = vmatprep.subr.mxu0 0.0
      %279 = vmatpush1.msra.mxu0 %v254
      %280 = vmatprep.subr.mxu0 0.0
      %281 = vmatpush1.msra.mxu0 0.0
      %282 = vmatprep.subr.mxu0 0.0
      %283 = vmatpush1.msra.mxu0 0.0
      %284 = vmatprep.subr.mxu0 0.0
      %285 = vmatpush1.msra.mxu0 0.0
      %286 = vmatprep.subr.mxu0 0.0
      %287 = vmatpush1.msra.mxu0 0.0
      %288 = vmatprep.subr.mxu0 0.0
      %289 = vmatpush1.msra.mxu0 0.0
      %290 = vmatprep.subr.mxu0 0.0
      %291 = vmatpush1.msra.mxu0 0.0
      %292 = vmatprep.subr.mxu0 0.0
      %293 = vmatpush1.msra.mxu0 0.0
      %294 = vmatprep.subr.mxu0 0.0
      %295 = vmatpush1.msra.mxu0 0.0
      %296 = vmatprep.subr.mxu0 0.0
      %297 = vmatpush1.msra.mxu0 0.0
      %298 = vmatprep.subr.mxu0 0.0
      %299 = vmatpush1.msra.mxu0 0.0
      %300 = vmatprep.subr.mxu0 0.0
      %301 = vmatpush1.msra.mxu0 0.0
      %302 = vmatprep.subr.mxu0 0.0
      %303 = vmatpush1.msra.mxu0 0.0
      %304 = vmatprep.subr.mxu0 0.0
      %305 = vmatpush1.msra.mxu0 0.0
      %306 = vmatprep.subr.mxu0 0.0
      %307 = vmatpush1.msra.mxu0 0.0
      %308 = vmatprep.subr.mxu0 0.0
      %309 = vmatpush1.msra.mxu0 0.0
      %310 = vmatprep.subr.mxu0 0.0
      %311 = vmatpush1.msra.mxu0 0.0
      %312 = vmatprep.subr.mxu0 0.0
      %313 = vmatpush1.msra.mxu0 0.0
      %314 = vmatprep.subr.mxu0 0.0
      %315 = vmatpush1.msra.mxu0 0.0
      %316 = vmatprep.subr.mxu0 0.0
      %317 = vmatpush1.msra.mxu0 0.0
      %318 = vmatprep.subr.mxu0 0.0
      %319 = vmatpush1.msra.mxu0 0.0
      %320 = vmatprep.subr.mxu0 0.0
      %321 = vmatpush1.msra.mxu0 0.0
      %322 = vmatprep.subr.mxu0 0.0
      %323 = vmatpush1.msra.mxu0 0.0
      %324 = vmatprep.subr.mxu0 0.0
      %325 = vmatpush1.msra.mxu0 0.0
      %326 = vmatprep.subr.mxu0 0.0
      %327 = vmatpush1.msra.mxu0 0.0
      %328 = vmatprep.subr.mxu0 0.0
      %329 = vmatpush1.msra.mxu0 0.0
      %330 = vmatprep.subr.mxu0 0.0
      %331 = vmatpush1.msra.mxu0 0.0
      %332 = vmatprep.subr.mxu0 0.0
      %333 = vmatpush1.msra.mxu0 0.0
      %334 = vmatprep.subr.mxu0 0.0
      %335 = vmatpush1.msra.mxu0 0.0
      %336 = vmatprep.mubr.f32.mxu0 0.0
      %337 = vmatmul.mubr.f32.gmra.mrb[0].mxu0 %v270
      %v338 = vpop.f32.mrb[0].mxu0
      %v339 = vadd.f32 %v266, %v338
      %v340 = vpop.f32.mrb[0].mxu0
      %341 = vdwg.mxu0
      %v342 = vmax.f32 %v339, 0.0
      %v345 = vunpack.c.l.s4 1966171168
      %v346 = vunpack.c.0.s8 %v345
      %v347 = vlaneseq
      %v348 = vshrl.u32 %v347, 7
      %v349 = vsub.s32 %v346, %v348
      %v350 = vrot.slane %v342, %v349
      %v351 = vcombine.high %v350, %v350
      %v353 = vunpack.c.l.s4 1966171168
      %v354 = vunpack.c.0.s8 %v353
      %v355 = vlaneseq
      %v356 = vshrl.u32 %v355, 7
      %v357 = vsub.s32 %v354, %v356
      %v358 = vrot.slane %v350, %v357
      %v360 = vunpack.c.l.s4 1966171168
      %v361 = vunpack.c.0.s8 %v360
      %v362 = vlaneseq
      %v363 = vshrl.u32 %v362, 7
      %v364 = vsub.s32 %v361, %v363
      %v365 = vrot.slane %v351, %v364
      %v366 = vcombine.high %v358, %v358
      %v367 = vcombine.high %v365, %v365
      %v368 = vlaneseq
      %v369 = vshrl.u32 %v368, 7
      %v370 = vsub.s32 0, %v369
      %v371 = vrot.slane %v358, %v370
      %v372 = vlaneseq
      %v373 = vshrl.u32 %v372, 7
      %v374 = vsub.s32 0, %v373
      %v375 = vrot.slane %v365, %v374
      %v376 = vlaneseq
      %v377 = vshrl.u32 %v376, 7
      %v378 = vsub.s32 0, %v377
      %v379 = vrot.slane %v366, %v378
      %v380 = vlaneseq
      %v381 = vshrl.u32 %v380, 7
      %v382 = vsub.s32 0, %v381
      %v383 = vrot.slane %v367, %v382
      %v388 = vmul.f32 %v256, %v371
      %v389 = vmul.f32 %v257, %v375
      %v390 = vmul.f32 %v258, %v379
      %v391 = vmul.f32 %v259, %v383
      %vm392 = vcmask 1043456
      %v393 = vsel %vm392, %v388, 0.0
      %v394 = vsel %vm392, %v389, 0.0
      %v395 = vadd.f32 %v393, %v394
      %v396 = vsel %vm392, %v390, 0.0
      %v397 = vadd.f32 %v395, %v396
      %v398 = vsel %vm392, %v391, 0.0
      %v399 = vadd.f32 %v397, %v398
      %v400 = vadd.f32 %v399, %v260
      %v401 = vmax.f32 %v400, 0.0
      %v402 = vxor.u32 %v401, 2147483648
      %v403 = vmul.f32 %v402, 1.442695
      %v404 = vpow.pop %v403
      %v405 = vadd.f32 %v404, 1.0
      %v406 = vrcp.pop %v405
      %v407 = vmul.f32 1.0, %v406
      %v408 = vadd.f32 %v407, 1.0
      %v409 = vmul.f32 %v408, %v342
      %410 = vst [vmem:[#allocation3] sm:$0xf] %v409
      %v411 = vld [vmem:[%s141] sm:$0xf]
      %v413 = vsel %vm268, %v411, 0
      %415 = vmatprep.subr.mxu0 0.0
      %416 = vmatpush1.msra.mxu0 %v251
      %417 = vmatprep.subr.mxu0 0.0
      %418 = vmatpush1.msra.mxu0 %v252
      %419 = vmatprep.subr.mxu0 0.0
      %420 = vmatpush1.msra.mxu0 %v253
      %421 = vmatprep.subr.mxu0 0.0
      %422 = vmatpush1.msra.mxu0 %v254
      %423 = vmatprep.subr.mxu0 0.0
      %424 = vmatpush1.msra.mxu0 0.0
      %425 = vmatprep.subr.mxu0 0.0
      %426 = vmatpush1.msra.mxu0 0.0
      %427 = vmatprep.subr.mxu0 0.0
      %428 = vmatpush1.msra.mxu0 0.0
      %429 = vmatprep.subr.mxu0 0.0
      %430 = vmatpush1.msra.mxu0 0.0
      %431 = vmatprep.subr.mxu0 0.0
      %432 = vmatpush1.msra.mxu0 0.0
      %433 = vmatprep.subr.mxu0 0.0
      %434 = vmatpush1.msra.mxu0 0.0
      %435 = vmatprep.subr.mxu0 0.0
      %436 = vmatpush1.msra.mxu0 0.0
      %437 = vmatprep.subr.mxu0 0.0
      %438 = vmatpush1.msra.mxu0 0.0
      %439 = vmatprep.subr.mxu0 0.0
      %440 = vmatpush1.msra.mxu0 0.0
      %441 = vmatprep.subr.mxu0 0.0
      %442 = vmatpush1.msra.mxu0 0.0
      %443 = vmatprep.subr.mxu0 0.0
      %444 = vmatpush1.msra.mxu0 0.0
      %445 = vmatprep.subr.mxu0 0.0
      %446 = vmatpush1.msra.mxu0 0.0
      %447 = vmatprep.subr.mxu0 0.0
      %448 = vmatpush1.msra.mxu0 0.0
      %449 = vmatprep.subr.mxu0 0.0
      %450 = vmatpush1.msra.mxu0 0.0
      %451 = vmatprep.subr.mxu0 0.0
      %452 = vmatpush1.msra.mxu0 0.0
      %453 = vmatprep.subr.mxu0 0.0
      %454 = vmatpush1.msra.mxu0 0.0
      %455 = vmatprep.subr.mxu0 0.0
      %456 = vmatpush1.msra.mxu0 0.0
      %457 = vmatprep.subr.mxu0 0.0
      %458 = vmatpush1.msra.mxu0 0.0
      %459 = vmatprep.subr.mxu0 0.0
      %460 = vmatpush1.msra.mxu0 0.0
      %461 = vmatprep.subr.mxu0 0.0
      %462 = vmatpush1.msra.mxu0 0.0
      %463 = vmatprep.subr.mxu0 0.0
      %464 = vmatpush1.msra.mxu0 0.0
      %465 = vmatprep.subr.mxu0 0.0
      %466 = vmatpush1.msra.mxu0 0.0
      %467 = vmatprep.subr.mxu0 0.0
      %468 = vmatpush1.msra.mxu0 0.0
      %469 = vmatprep.subr.mxu0 0.0
      %470 = vmatpush1.msra.mxu0 0.0
      %471 = vmatprep.subr.mxu0 0.0
      %472 = vmatpush1.msra.mxu0 0.0
      %473 = vmatprep.subr.mxu0 0.0
      %474 = vmatpush1.msra.mxu0 0.0
      %475 = vmatprep.subr.mxu0 0.0
      %476 = vmatpush1.msra.mxu0 0.0
      %477 = vmatprep.subr.mxu0 0.0
      %478 = vmatpush1.msra.mxu0 0.0
      %479 = vmatprep.mubr.f32.mxu0 0.0
      %480 = vmatmul.mubr.f32.gmra.mrb[0].mxu0 %v413
      %v481 = vpop.f32.mrb[0].mxu0
      %v482 = vadd.f32 %v266, %v481
      %v483 = vpop.f32.mrb[0].mxu0
      %484 = vdwg.mxu0
      %v485 = vmax.f32 %v482, 0.0
      %v488 = vunpack.c.l.s4 1966171168
      %v489 = vunpack.c.0.s8 %v488
      %v490 = vlaneseq
      %v491 = vshrl.u32 %v490, 7
      %v492 = vsub.s32 %v489, %v491
      %v493 = vrot.slane %v485, %v492
      %v494 = vcombine.high %v493, %v493
      %v496 = vunpack.c.l.s4 1966171168
      %v497 = vunpack.c.0.s8 %v496
      %v498 = vlaneseq
      %v499 = vshrl.u32 %v498, 7
      %v500 = vsub.s32 %v497, %v499
      %v501 = vrot.slane %v493, %v500
      %v503 = vunpack.c.l.s4 1966171168
      %v504 = vunpack.c.0.s8 %v503
      %v505 = vlaneseq
      %v506 = vshrl.u32 %v505, 7
      %v507 = vsub.s32 %v504, %v506
      %v508 = vrot.slane %v494, %v507
      %v509 = vcombine.high %v501, %v501
      %v510 = vcombine.high %v508, %v508
      %v511 = vlaneseq
      %v512 = vshrl.u32 %v511, 7
      %v513 = vsub.s32 0, %v512
      %v514 = vrot.slane %v501, %v513
      %v515 = vlaneseq
      %v516 = vshrl.u32 %v515, 7
      %v517 = vsub.s32 0, %v516
      %v518 = vrot.slane %v508, %v517
      %v519 = vlaneseq
      %v520 = vshrl.u32 %v519, 7
      %v521 = vsub.s32 0, %v520
      %v522 = vrot.slane %v509, %v521
      %v523 = vlaneseq
      %v524 = vshrl.u32 %v523, 7
      %v525 = vsub.s32 0, %v524
      %v526 = vrot.slane %v510, %v525
      %v531 = vmul.f32 %v256, %v514
      %v532 = vmul.f32 %v257, %v518
      %v533 = vmul.f32 %v258, %v522
      %v534 = vmul.f32 %v259, %v526
      %v535 = vsel %vm392, %v531, 0.0
      %v536 = vsel %vm392, %v532, 0.0
      %v537 = vadd.f32 %v535, %v536
      %v538 = vsel %vm392, %v533, 0.0
      %v539 = vadd.f32 %v537, %v538
      %v540 = vsel %vm392, %v534, 0.0
      %v541 = vadd.f32 %v539, %v540
      %v542 = vadd.f32 %v541, %v260
      %v543 = vmax.f32 %v542, 0.0
      %v544 = vxor.u32 %v543, 2147483648
      %v545 = vmul.f32 %v544, 1.442695
      %v546 = vpow.pop %v545
      %v547 = vadd.f32 %v546, 1.0
      %v548 = vrcp.pop %v547
      %v549 = vmul.f32 1.0, %v548
      %v550 = vadd.f32 %v549, 1.0
      %v551 = vmul.f32 %v550, %v485
      %s552 = scalar_lea.vmem [#allocation3], 4
      %553 = vst [vmem:[%s552] sm:$0xf] %v551
    $region33: #{tpu_custom_call.1} parent=1 // pred_fallthru
      _
    // Predicated region
    $region34: #{tpu_custom_call.1} parent=1 // pred_check
      _
    $region35: #{tpu_custom_call.1} parent=1 // pred_check_branch
      %555 = sbr.rel (0) target = $region37
    $region36: #{tpu_custom_call.1} parent=1 // pred_region
      %s557 = ssub.s32 128, 128
      %558 = vsyncadd [#allocation4], %s557
      %s559 = sshll.u32 [#allocation3], 4
      %s560 = int_to_ptr.vmem [resolvable:$true] %s559
      %565 = dma.vmem_to_hbm [thread:$0]  %s560, 128, %s6, [#allocation4], 64, 64, 4
    $region37: #{tpu_custom_call.1} parent=1 // pred_fallthru
      _
    // Predicated region
    $region38: #{tpu_custom_call.1} parent=1 // pred_check
      _
    $region39: #{tpu_custom_call.1} parent=1 // pred_check_branch
      %567 = sbr.rel (0) target = $region41
    $region40: #{tpu_custom_call.1} parent=1 // pred_region
      %568 = dma.done [#allocation4], 128
    $region41: #{tpu_custom_call.1} parent=1 // pred_fallthru
      _
    %569 = vsyncpa [#allocation4], 1

</llo_original>
